<compile_context>
chip_gen: v7x
topology: tpu7x:2x2x1
jax: 0.10.0
libtpu: 0.0.40
codegen_flags: <defaults>
</compile_context>

<pallas_src>
import functools
import math

import jax
import jax.numpy as jnp
from jax.experimental import pallas as pl
from jax.experimental.pallas import tpu as pltpu


# --------------------------------------------------------------------------- #
# Kernels
# --------------------------------------------------------------------------- #
def _residual_linear_fullk_kernel(x_ref, w_ref, xr_ref, b_ref, o_ref, *, mm_dtype):
    """out = x @ W_kn + b + x, full-K tile (no reduction grid axis).

    x_ref : (tm, h_pad)  matmul LHS tile (native dtype, cast in-kernel)
    w_ref : (h_pad, tn)  weight tile, canonical (K, N) layout
    xr_ref: (tm, tn)     residual tile (same HBM array as x, output-tile indexed)
    b_ref : (1, tn)      bias tile (f32)
    o_ref : (tm, tn)     output tile
    """
    acc = jnp.dot(
        x_ref[...].astype(mm_dtype),
        w_ref[...],
        preferred_element_type=jnp.float32,
    )
    out = acc + b_ref[...].astype(jnp.float32) + xr_ref[...].astype(jnp.float32)
    o_ref[...] = out.astype(o_ref.dtype)


def _residual_linear_ktiled_kernel(x_ref, w_ref, xr_ref, b_ref, o_ref, acc_ref,
                                   *, mm_dtype):
    """K-tiled fallback with an f32 VMEM accumulator (init/finalize via pl.when)."""
    k = pl.program_id(2)

    @pl.when(k == 0)
    def _init():
        acc_ref[...] = jnp.zeros_like(acc_ref)

    acc_ref[...] += jnp.dot(
        x_ref[...].astype(mm_dtype),
        w_ref[...],
        preferred_element_type=jnp.float32,
    )

    @pl.when(k == pl.num_programs(2) - 1)
    def _finalize():
        out = (
            acc_ref[...]
            + b_ref[...].astype(jnp.float32)
            + xr_ref[...].astype(jnp.float32)
        )
        o_ref[...] = out.astype(o_ref.dtype)


# --------------------------------------------------------------------------- #
# One-time weight preparation (hoisted out of the per-call wrapper)
# --------------------------------------------------------------------------- #
def prepare_residual_linear_params(w, b, *, mxu_dtype=jnp.bfloat16):
    """Pad + transpose + cast nn.Linear params once.

    w: (hidden, hidden) in PyTorch (out_features, in_features) layout.
    b: (hidden,)
    Returns (w_kn, b_p):
      w_kn: (h_pad, h_pad) in canonical (K=in, N=out) layout, dtype=mxu_dtype.
      b_p : (1, h_pad) float32.
    """
    hidden = w.shape[0]
    h_pad = max(128, ((hidden + 127) // 128) * 128)
    w_kn = (
        jnp.zeros((h_pad, h_pad), mxu_dtype)
        .at[:hidden, :hidden]
        .set(w.T.astype(mxu_dtype))  # (in, out) so the kernel does a plain x @ W_kn
    )
    b_p = jnp.zeros((1, h_pad), jnp.float32).at[0, :hidden].set(b.astype(jnp.float32))
    return w_kn, b_p


# --------------------------------------------------------------------------- #
# Tile / VMEM budgeting
# --------------------------------------------------------------------------- #
def _vmem_limit_bytes():
    cap = 64 * 1024 * 1024  # conservative fallback (v7x-sized)
    try:
        info = pltpu.get_tpu_info()
        cap = int(getattr(info, "vmem_capacity_bytes", cap))
    except Exception:
        pass
    return int(min(cap * 3 // 4, 96 * 1024 * 1024))


def _select_tiles(m, h_pad, x_bytes, w_bytes, out_bytes, vmem_budget):
    """Returns (tm, tn, tk, m_pad, k_tiled)."""
    m8 = max(8, ((m + 7) // 8) * 8)

    # tm ladder: minimize padded rows, tie-break towards the largest tile.
    best = None
    for cand in (512, 384, 256, 192, 128, 64, 32, 16, 8):
        padded = ((m8 + cand - 1) // cand) * cand
        key = (padded, -cand)
        if best is None or key < best[0]:
            best = (key, cand)
    tm = best[1]

    # tn: largest divisor of h_pad from the ladder.
    tn = h_pad
    for cand in (512, 384, 256, 128):
        if h_pad % cand == 0:
            tn = cand
            break
    # Keep >= 2 parallel output tiles so both v7x TensorCores get work.
    if ((m8 + tm - 1) // tm) == 1 and tn == h_pad and h_pad % 256 == 0:
        tn = h_pad // 2

    def bytes_needed(tm_, tn_, tk_, k_tiled):
        per = (
            tm_ * tk_ * x_bytes      # matmul LHS tile
            + tk_ * tn_ * w_bytes    # weight tile
            + tn_ * 4                # bias tile
            + tm_ * tn_ * x_bytes    # residual tile
            + tm_ * tn_ * out_bytes  # output tile
        )
        total = 2 * per              # double-buffered by the pipeline
        if k_tiled:
            total += tm_ * tn_ * 4   # f32 accumulator scratch
        return total

    tn_opts = [c for c in (512, 384, 256, 128) if c <= tn and h_pad % c == 0] or [tn]
    tm_opts = [c for c in (512, 384, 256, 192, 128, 64, 32, 16, 8) if c <= tm] or [tm]

    # Preferred: full-K tile -> no reduction axis, no accumulator RMW.
    for tn_c in tn_opts:
        for tm_c in tm_opts:
            if bytes_needed(tm_c, tn_c, h_pad, False) <= vmem_budget:
                m_pad = ((m8 + tm_c - 1) // tm_c) * tm_c
                return tm_c, tn_c, h_pad, m_pad, False

    # Fallback: K-tiled grid with an f32 accumulator, largest tk that fits.
    for tn_c in tn_opts:
        for tm_c in tm_opts:
            for tk_c in (2048, 1024, 512, 256, 128):
                if h_pad % tk_c:
                    continue
                if bytes_needed(tm_c, tn_c, tk_c, True) <= vmem_budget:
                    m_pad = ((m8 + tm_c - 1) // tm_c) * tm_c
                    return tm_c, tn_c, tk_c, m_pad, True

    # Last resort: minimal tiles.
    m_pad = ((m8 + 7) // 8) * 8
    return 8, 128, 128, m_pad, True


# --------------------------------------------------------------------------- #
# Wrapper
# --------------------------------------------------------------------------- #
def residual_linear(x, w_prepared, b_prepared):
    """Residual(Linear)(x) = x @ W^T + b + x.

    x         : (..., hidden)
    w_prepared: (h_pad, h_pad) prepared weight, (K, N) layout (see prepare_...).
    b_prepared: (1, h_pad) prepared f32 bias.
    """
    *lead, hidden = x.shape
    h_pad = w_prepared.shape[1]
    m = int(math.prod(lead)) if lead else 1
    x2d = x.reshape(m, hidden)

    out_dtype = x.dtype
    mm_dtype = w_prepared.dtype
    x_bytes = jnp.dtype(out_dtype).itemsize
    w_bytes = jnp.dtype(mm_dtype).itemsize

    vmem_limit = _vmem_limit_bytes()
    vmem_budget = int(vmem_limit * 0.7)
    tm, tn, tk, m_pad, k_tiled = _select_tiles(
        m, h_pad, x_bytes, w_bytes, x_bytes, vmem_budget
    )

    # Pad x once, in its native dtype; it is used both as the matmul LHS and
    # as the residual (zero padding is semantically inert).
    if m_pad == m and h_pad == hidden:
        x_p = x2d
    else:
        x_p = jnp.zeros((m_pad, h_pad), out_dtype).at[:m, :hidden].set(x2d)

    cost = pl.CostEstimate(
        flops=2 * m_pad * h_pad * h_pad,
        transcendentals=0,
        bytes_accessed=int(
            2 * m_pad * h_pad * x_bytes      # x read as LHS + residual
            + h_pad * h_pad * w_bytes        # weights
            + h_pad * 4                      # bias
            + m_pad * h_pad * x_bytes        # output
        ),
    )

    if not k_tiled:
        grid = (m_pad // tm, h_pad // tn)
        kernel = functools.partial(_residual_linear_fullk_kernel, mm_dtype=mm_dtype)
        out2d = pl.pallas_call(
            kernel,
            out_shape=jax.ShapeDtypeStruct((m_pad, h_pad), out_dtype),
            grid=grid,
            in_specs=[
                pl.BlockSpec((tm, h_pad), lambda i, j: (i, 0)),  # matmul LHS x
                pl.BlockSpec((h_pad, tn), lambda i, j: (0, j)),  # W in (K, N) layout
                pl.BlockSpec((tm, tn), lambda i, j: (i, j)),     # residual x (same array)
                pl.BlockSpec((1, tn), lambda i, j: (0, j)),      # bias
            ],
            out_specs=pl.BlockSpec((tm, tn), lambda i, j: (i, j)),
            compiler_params=pltpu.CompilerParams(
                dimension_semantics=("parallel", "parallel"),
                vmem_limit_bytes=vmem_limit,
            ),
            cost_estimate=cost,
        )(x_p, w_prepared, x_p, b_prepared)
    else:
        grid = (m_pad // tm, h_pad // tn, h_pad // tk)
        kernel = functools.partial(_residual_linear_ktiled_kernel, mm_dtype=mm_dtype)
        out2d = pl.pallas_call(
            kernel,
            out_shape=jax.ShapeDtypeStruct((m_pad, h_pad), out_dtype),
            grid=grid,
            in_specs=[
                pl.BlockSpec((tm, tk), lambda i, j, k: (i, k)),  # matmul LHS x
                pl.BlockSpec((tk, tn), lambda i, j, k: (k, j)),  # W in (K, N) layout
                pl.BlockSpec((tm, tn), lambda i, j, k: (i, j)),  # residual x (same array)
                pl.BlockSpec((1, tn), lambda i, j, k: (0, j)),   # bias
            ],
            out_specs=pl.BlockSpec((tm, tn), lambda i, j, k: (i, j)),
            scratch_shapes=[pltpu.VMEM((tm, tn), jnp.float32)],
            compiler_params=pltpu.CompilerParams(
                dimension_semantics=("parallel", "parallel", "arbitrary"),
                vmem_limit_bytes=vmem_limit,
            ),
            cost_estimate=cost,
        )(x_p, w_prepared, x_p, b_prepared)

    out = out2d
    if m_pad != m or h_pad != hidden:
        out = out[:m, :hidden]
    return out.reshape(*lead, hidden)


# --------------------------------------------------------------------------- #
# Demo / correctness check
# --------------------------------------------------------------------------- #
if __name__ == "__main__":
    batch, seq, hidden = 2, 8, 32

    key = jax.random.PRNGKey(0)
    kx, kw, kb = jax.random.split(key, 3)

    x = jax.random.normal(kx, (batch, seq, hidden), dtype=jnp.float32)
    # Deterministic nn.Linear-style init (uniform in +-1/sqrt(fan_in))
    bound = 1.0 / math.sqrt(hidden)
    w = jax.random.uniform(kw, (hidden, hidden), jnp.float32, -bound, bound)
    b = jax.random.uniform(kb, (hidden,), jnp.float32, -bound, bound)

    ref = x @ w.T + b + x

    # Exact f32 MXU operands: tight tolerance.
    w_f32, b_p32 = prepare_residual_linear_params(w, b, mxu_dtype=jnp.float32)
    out = residual_linear(x, w_f32, b_p32)
    jax.block_until_ready(out)
    assert out.shape == x.shape
    assert jnp.allclose(out, ref, atol=1e-5, rtol=1e-5), "f32 path mismatch"

    # bf16 MXU operands (fast path on v5e/v6e/v7x); accumulate/bias/residual f32.
    w_bf16, b_pbf = prepare_residual_linear_params(w, b, mxu_dtype=jnp.bfloat16)
    out_bf16 = residual_linear(x, w_bf16, b_pbf)
    jax.block_until_ready(out_bf16)
    assert jnp.allclose(out_bf16, ref, atol=5e-2, rtol=5e-2), "bf16 path mismatch"

    print("KERNEL_OK")
</pallas_src>

<mosaic_0001>
module attributes {stable_mosaic.version = 11 : i64} {
  func.func @_residual_linear_fullk_kernel(%arg0: i32, %arg1: i32, %arg2: memref<16x128xf32, #tpu.memory_space<vmem>>, %arg3: memref<128x128xf32, #tpu.memory_space<vmem>>, %arg4: memref<16x128xf32, #tpu.memory_space<vmem>>, %arg5: memref<1x128xf32, #tpu.memory_space<vmem>>, %arg6: memref<16x128xf32, #tpu.memory_space<vmem>>) attributes {dimension_semantics = [#tpu.dimension_semantics<parallel>, #tpu.dimension_semantics<parallel>], iteration_bounds = array<i64: 1, 1>, scalar_prefetch = 0 : i64, scratch_operands = 0 : i64, tpu.core_type = #tpu.core_type<tc>, window_params = [{transform_indices = @transform_0, window_bounds = array<i64: 16, 128>}, {transform_indices = @transform_1, window_bounds = array<i64: 128, 128>}, {transform_indices = @transform_2, window_bounds = array<i64: 16, 128>}, {transform_indices = @transform_3, window_bounds = array<i64: 1, 128>}, {transform_indices = @transform_4, window_bounds = array<i64: 16, 128>}]} {
    %c0 = arith.constant 0 : index
    %c0_0 = arith.constant 0 : index
    %0 = vector.load %arg2[%c0, %c0_0] : memref<16x128xf32, #tpu.memory_space<vmem>>, vector<16x128xf32>
    %c0_1 = arith.constant 0 : index
    %c0_2 = arith.constant 0 : index
    %1 = vector.load %arg3[%c0_1, %c0_2] : memref<128x128xf32, #tpu.memory_space<vmem>>, vector<128x128xf32>
    %cst = arith.constant dense<0.000000e+00> : vector<16x128xf32>
    %2 = tpu.matmul %0, %1, %cst {dimension_numbers = #tpu.dot_dimension_numbers<[1], [0], [0], [1], [0, 0, 1, 1], [], []>} : vector<16x128xf32>, vector<128x128xf32>, vector<16x128xf32> -> vector<16x128xf32>
    %c0_3 = arith.constant 0 : index
    %c0_4 = arith.constant 0 : index
    %3 = vector.load %arg5[%c0_3, %c0_4] : memref<1x128xf32, #tpu.memory_space<vmem>>, vector<1x128xf32>
    %4 = vector.broadcast %3 : vector<1x128xf32> to vector<16x128xf32>
    %5 = arith.addf %2, %4 : vector<16x128xf32>
    %c0_5 = arith.constant 0 : index
    %c0_6 = arith.constant 0 : index
    %6 = vector.load %arg4[%c0_5, %c0_6] : memref<16x128xf32, #tpu.memory_space<vmem>>, vector<16x128xf32>
    %7 = arith.addf %5, %6 : vector<16x128xf32>
    %c0_7 = arith.constant 0 : index
    %c0_8 = arith.constant 0 : index
    %8 = vector.load %arg6[%c0_7, %c0_8] : memref<16x128xf32, #tpu.memory_space<vmem>>, vector<16x128xf32>
    tpu.vector_store %arg6[%c0_7, %c0_8], %7 {strides = array<i32>} : memref<16x128xf32, #tpu.memory_space<vmem>>, vector<16x128xf32>,
    return
  }
  func.func @transform_0(%arg0: i32, %arg1: i32) -> (i32, i32) {
    %c0_i32 = arith.constant 0 : i32
    %c0_i32_0 = arith.constant 0 : i32
    return %arg0, %c0_i32 : i32, i32
  }
  func.func @transform_1(%arg0: i32, %arg1: i32) -> (i32, i32) {
    %c0_i32 = arith.constant 0 : i32
    %c0_i32_0 = arith.constant 0 : i32
    return %c0_i32, %arg1 : i32, i32
  }
  func.func @transform_2(%arg0: i32, %arg1: i32) -> (i32, i32) {
    %c0_i32 = arith.constant 0 : i32
    return %arg0, %arg1 : i32, i32
  }
  func.func @transform_3(%arg0: i32, %arg1: i32) -> (i32, i32) {
    %c0_i32 = arith.constant 0 : i32
    %c0_i32_0 = arith.constant 0 : i32
    return %c0_i32, %arg1 : i32, i32
  }
  func.func @transform_4(%arg0: i32, %arg1: i32) -> (i32, i32) {
    %c0_i32 = arith.constant 0 : i32
    return %arg0, %arg1 : i32, i32
  }
}

</mosaic_0001>

<llo_original>
// kernel: tpu_custom_call.1
$region0: #{tpu_custom_call.1}
  #allocation0 [shape = 'u32[]', space=smem, size = 0x4, offset = 0x4, fixed_abs, tag = 'smem constant byte address 0x4 - core index']
  #allocation1 [shape = 'u32[144,128]{1,0:T(1,128)}', space=vmem, size = 0x12000, scoped, tag = 'internal scratch']
  %s0 = inlined_call_operand.hbm [shape: f32[16,128], index: 0, kind: input, shape index: {}]
  %s1 = inlined_call_operand.hbm [shape: f32[128,128], index: 1, kind: input, shape index: {}]
  %s2 = inlined_call_operand.hbm [shape: f32[16,128], index: 2, kind: input, shape index: {}]
  %s3 = inlined_call_operand.vmem [shape: f32[1,128], index: 3, kind: input, shape index: {}]
  %s4 = inlined_call_operand.hbm [shape: f32[16,128], index: 4, kind: output, shape index: {}]
  %s5 = sld [smem:[#allocation0]]
  $region38: #{tpu_custom_call.1} parent=0
    _
  %s7 = ssub.s32 1, %s5
  %s8 = scalar_select 0, %s7, %s5
  $region1: #{tpu_custom_call.1} parent=0
    #allocation2 [shape = 'u8[8192]{0}', space=vmem, size = 0x2000, scoped, tag = 'input window, operand 0, single buffered']
    #allocation3 [shape = 's32[1]{0}', space=sflag, size = 0x4, scoped, tag = 'scoped memory for tpu_custom_call.1']
    #allocation4 [shape = 's32[1]{0}', space=sflag, size = 0x4, scoped, tag = 'scoped memory for tpu_custom_call.1']
    #allocation5 [shape = 'u8[65536]{0}', space=vmem, size = 0x10000, scoped, tag = 'input window, operand 1, single buffered']
    #allocation6 [shape = 's32[1]{0}', space=sflag, size = 0x4, scoped, tag = 'scoped memory for tpu_custom_call.1']
    #allocation7 [shape = 'u8[8192]{0}', space=vmem, size = 0x2000, scoped, tag = 'input window, operand 2, single buffered']
    #allocation8 [shape = 'u8[8192]{0}', space=vmem, size = 0x2000, scoped, tag = 'output window, operand 0, single buffered']
    %9 = vsyncpa [#allocation3], 0
    %10 = vsyncpa [#allocation6], 0
    %11 = vsyncpa [#allocation4], 0
    // Predicated region
    $region2: #{tpu_custom_call.1} parent=1 // pred_check
      _
    $region3: #{tpu_custom_call.1} parent=1 // pred_check_branch
      %13 = sbr.rel (0) target = $region5
    $region4: #{tpu_custom_call.1} parent=1 // pred_region
      %s15 = ssub.s32 256, 256
      %16 = vsyncadd [#allocation3], %s15
      %s17 = sshll.u32 [#allocation2], 4
      %s18 = int_to_ptr.vmem [resolvable:$true] %s17
      %23 = dma.hbm_to_vmem [thread:$0]  %s0, 256, %s18, [#allocation3], 128, 128, 8
    $region5: #{tpu_custom_call.1} parent=1 // pred_fallthru
      _
    // Predicated region
    $region6: #{tpu_custom_call.1} parent=1 // pred_check
      _
    $region7: #{tpu_custom_call.1} parent=1 // pred_check_branch
      %25 = sbr.rel (0) target = $region9
    $region8: #{tpu_custom_call.1} parent=1 // pred_region
      %s27 = ssub.s32 2048, 2048
      %28 = vsyncadd [#allocation6], %s27
      %s29 = sshll.u32 [#allocation5], 4
      %s30 = int_to_ptr.vmem [resolvable:$true] %s29
      %35 = dma.hbm_to_vmem [thread:$0]  %s1, 2048, %s30, [#allocation6], 128, 128, 8
    $region9: #{tpu_custom_call.1} parent=1 // pred_fallthru
      _
    // Predicated region
    $region10: #{tpu_custom_call.1} parent=1 // pred_check
      _
    $region11: #{tpu_custom_call.1} parent=1 // pred_check_branch
      %37 = sbr.rel (0) target = $region13
    $region12: #{tpu_custom_call.1} parent=1 // pred_region
      %s39 = ssub.s32 256, 256
      %40 = vsyncadd [#allocation6], %s39
      %s41 = sshll.u32 [#allocation7], 4
      %s42 = int_to_ptr.vmem [resolvable:$true] %s41
      %47 = dma.hbm_to_vmem [thread:$0]  %s2, 256, %s42, [#allocation6], 128, 128, 8
    $region13: #{tpu_custom_call.1} parent=1 // pred_fallthru
      _
    // Predicated region
    $region14: #{tpu_custom_call.1} parent=1 // pred_check
      _
    $region15: #{tpu_custom_call.1} parent=1 // pred_check_branch
      %49 = sbr.rel (0) target = $region17
    $region16: #{tpu_custom_call.1} parent=1 // pred_region
      _
    $region17: #{tpu_custom_call.1} parent=1 // pred_fallthru
      _
    // Predicated region
    $region18: #{tpu_custom_call.1} parent=1 // pred_check
      _
    $region19: #{tpu_custom_call.1} parent=1 // pred_check_branch
      %51 = sbr.rel (0) target = $region21
    $region20: #{tpu_custom_call.1} parent=1 // pred_region
      %52 = dma.done [#allocation3], 256
    $region21: #{tpu_custom_call.1} parent=1 // pred_fallthru
      _
    // Predicated region
    $region22: #{tpu_custom_call.1} parent=1 // pred_check
      _
    $region23: #{tpu_custom_call.1} parent=1 // pred_check_branch
      %54 = sbr.rel (0) target = $region25
    $region24: #{tpu_custom_call.1} parent=1 // pred_region
      %55 = dma.done [#allocation6], 2048
    $region25: #{tpu_custom_call.1} parent=1 // pred_fallthru
      _
    // Predicated region
    $region26: #{tpu_custom_call.1} parent=1 // pred_check
      _
    $region27: #{tpu_custom_call.1} parent=1 // pred_check_branch
      %57 = sbr.rel (0) target = $region29
    $region28: #{tpu_custom_call.1} parent=1 // pred_region
      %58 = dma.done [#allocation6], 256
    $region29: #{tpu_custom_call.1} parent=1 // pred_fallthru
      _
    %v59 = vld [vmem:[#allocation2] sm:$0xff]
    %v60 = vld [vmem:[#allocation2 + $0x8] sm:$0xff]
    %v61 = vld [vmem:[#allocation5] sm:$0xff]
    %v62 = vld [vmem:[#allocation5 + $0x8] sm:$0xff]
    %v63 = vld [vmem:[#allocation5 + $0x10] sm:$0xff]
    %v64 = vld [vmem:[#allocation5 + $0x18] sm:$0xff]
    %v65 = vld [vmem:[#allocation5 + $0x20] sm:$0xff]
    %v66 = vld [vmem:[#allocation5 + $0x28] sm:$0xff]
    %v67 = vld [vmem:[#allocation5 + $0x30] sm:$0xff]
    %v68 = vld [vmem:[#allocation5 + $0x38] sm:$0xff]
    %v69 = vld [vmem:[#allocation5 + $0x40] sm:$0xff]
    %v70 = vld [vmem:[#allocation5 + $0x48] sm:$0xff]
    %v71 = vld [vmem:[#allocation5 + $0x50] sm:$0xff]
    %v72 = vld [vmem:[#allocation5 + $0x58] sm:$0xff]
    %v73 = vld [vmem:[#allocation5 + $0x60] sm:$0xff]
    %v74 = vld [vmem:[#allocation5 + $0x68] sm:$0xff]
    %v75 = vld [vmem:[#allocation5 + $0x70] sm:$0xff]
    %v76 = vld [vmem:[#allocation5 + $0x78] sm:$0xff]
    %v77 = vld [vmem:[%s3] sm:$0x1]
    %v79 = vlaneseq
    %v80 = vshrl.u32 %v79, 7
    %v81 = vsub.s32 0, %v80
    %v82 = vrot.slane %v77, %v81
    %84 = vmatprep.subr.mxu0 0.0
    %85 = vmatpush1.msra.mxu0 %v61
    %86 = vmatprep.subr.mxu0 0.0
    %87 = vmatpush1.msra.mxu0 %v62
    %88 = vmatprep.subr.mxu0 0.0
    %89 = vmatpush1.msra.mxu0 %v63
    %90 = vmatprep.subr.mxu0 0.0
    %91 = vmatpush1.msra.mxu0 %v64
    %92 = vmatprep.subr.mxu0 0.0
    %93 = vmatpush1.msra.mxu0 %v65
    %94 = vmatprep.subr.mxu0 0.0
    %95 = vmatpush1.msra.mxu0 %v66
    %96 = vmatprep.subr.mxu0 0.0
    %97 = vmatpush1.msra.mxu0 %v67
    %98 = vmatprep.subr.mxu0 0.0
    %99 = vmatpush1.msra.mxu0 %v68
    %100 = vmatprep.subr.mxu0 0.0
    %101 = vmatpush1.msra.mxu0 %v69
    %102 = vmatprep.subr.mxu0 0.0
    %103 = vmatpush1.msra.mxu0 %v70
    %104 = vmatprep.subr.mxu0 0.0
    %105 = vmatpush1.msra.mxu0 %v71
    %106 = vmatprep.subr.mxu0 0.0
    %107 = vmatpush1.msra.mxu0 %v72
    %108 = vmatprep.subr.mxu0 0.0
    %109 = vmatpush1.msra.mxu0 %v73
    %110 = vmatprep.subr.mxu0 0.0
    %111 = vmatpush1.msra.mxu0 %v74
    %112 = vmatprep.subr.mxu0 0.0
    %113 = vmatpush1.msra.mxu0 %v75
    %114 = vmatprep.subr.mxu0 0.0
    %115 = vmatpush1.msra.mxu0 %v76
    %116 = vmatprep.subr.mxu0 0.0
    %117 = vmatpush1.msra.mxu0 0.0
    %118 = vmatprep.subr.mxu0 0.0
    %119 = vmatpush1.msra.mxu0 0.0
    %120 = vmatprep.subr.mxu0 0.0
    %121 = vmatpush1.msra.mxu0 0.0
    %122 = vmatprep.subr.mxu0 0.0
    %123 = vmatpush1.msra.mxu0 0.0
    %124 = vmatprep.subr.mxu0 0.0
    %125 = vmatpush1.msra.mxu0 0.0
    %126 = vmatprep.subr.mxu0 0.0
    %127 = vmatpush1.msra.mxu0 0.0
    %128 = vmatprep.subr.mxu0 0.0
    %129 = vmatpush1.msra.mxu0 0.0
    %130 = vmatprep.subr.mxu0 0.0
    %131 = vmatpush1.msra.mxu0 0.0
    %132 = vmatprep.subr.mxu0 0.0
    %133 = vmatpush1.msra.mxu0 0.0
    %134 = vmatprep.subr.mxu0 0.0
    %135 = vmatpush1.msra.mxu0 0.0
    %136 = vmatprep.subr.mxu0 0.0
    %137 = vmatpush1.msra.mxu0 0.0
    %138 = vmatprep.subr.mxu0 0.0
    %139 = vmatpush1.msra.mxu0 0.0
    %140 = vmatprep.subr.mxu0 0.0
    %141 = vmatpush1.msra.mxu0 0.0
    %142 = vmatprep.subr.mxu0 0.0
    %143 = vmatpush1.msra.mxu0 0.0
    %144 = vmatprep.subr.mxu0 0.0
    %145 = vmatpush1.msra.mxu0 0.0
    %146 = vmatprep.subr.mxu0 0.0
    %147 = vmatpush1.msra.mxu0 0.0
    %148 = vmatprep.mubr.f32.mxu0 0.0
    %149 = vmatmul.mubr.f32.gmra.mrb[0].mxu0 %v59
    %v150 = vpop.f32.mrb[0].mxu0
    %v151 = vadd.f32 %v82, %v150
    %v152 = vpop.f32.mrb[0].mxu0
    %153 = vmatprep.mubr.f32.mxu0 0.0
    %154 = vmatmul.mubr.f32.gmra.mrb[0].mxu0 %v60
    %v155 = vpop.f32.mrb[0].mxu0
    %v156 = vadd.f32 %v82, %v155
    %v157 = vpop.f32.mrb[0].mxu0
    %158 = vdwg.mxu0
    %v159 = vld [vmem:[#allocation7] sm:$0xff]
    %v160 = vld [vmem:[#allocation7 + $0x8] sm:$0xff]
    %v161 = vadd.f32 %v151, %v159
    %v162 = vadd.f32 %v156, %v160
    %163 = vst [vmem:[#allocation8] sm:$0xff] %v161
    %164 = vst [vmem:[#allocation8 + $0x8] sm:$0xff] %v162
    // Predicated region
    $region30: #{tpu_custom_call.1} parent=1 // pred_check
      _
    $region31: #{tpu_custom_call.1} parent=1 // pred_check_branch
      %166 = sbr.rel (0) target = $region33
    $region32: #{tpu_custom_call.1} parent=1 // pred_region
      %s168 = ssub.s32 256, 256
      %169 = vsyncadd [#allocation4], %s168
      %s170 = sshll.u32 [#allocation8], 4
      %s171 = int_to_ptr.vmem [resolvable:$true] %s170
      %176 = dma.vmem_to_hbm [thread:$0]  %s171, 256, %s4, [#allocation4], 128, 128, 8
    $region33: #{tpu_custom_call.1} parent=1 // pred_fallthru
      _
    // Predicated region
    $region34: #{tpu_custom_call.1} parent=1 // pred_check
      _
    $region35: #{tpu_custom_call.1} parent=1 // pred_check_branch
      %178 = sbr.rel (0) target = $region37
    $region36: #{tpu_custom_call.1} parent=1 // pred_region
      %179 = dma.done [#allocation4], 256
    $region37: #{tpu_custom_call.1} parent=1 // pred_fallthru
      _
    %180 = vsyncpa [#allocation3], 1
    %181 = vsyncpa [#allocation6], 1
    %182 = vsyncpa [#allocation4], 1

</llo_original>
